<compile_context>
chip_gen: v7x
topology: tpu7x:2x2x1
jax: 0.10.0
libtpu: 0.0.40
codegen_flags: <defaults>
</compile_context>

<pallas_src>
import jax
import jax.numpy as jnp
import numpy as np
from jax.experimental import pallas as pl
from jax.experimental.pallas import tpu as pltpu


def lstm_classifier_kernel(ids_ref,       # (T, 1)      int32 token ids
                           embproj_ref,   # (vocab, 4H) f32  folded  emb @ W_ih^T + (b_ih+b_hh)
                           whh_ref,       # (H, 4H)     f32  pre-transposed W_hh
                           wout_ref,      # (H, TAG)    f32  pre-transposed hidden2tag W
                           bout_ref,      # (1, TAG)    f32
                           out_ref,       # (T, TAG)    f32  log-softmax scores (single store)
                           hs_ref):       # (T, H)      f32  VMEM scratch for hidden states
    T, TAG = out_ref.shape
    vocab = embproj_ref.shape[0]
    H = whh_ref.shape[0]

    # (1) Embedding lookup + input projection + bias as ONE MXU matmul against the folded
    #     (vocab, 4H) table (exact: f32 0/1 one-hot rows pick table rows).
    #     Out-of-range ids would yield an all-zero row (checked host-side in the wrapper).
    ids = ids_ref[...]                                                  # (T, 1) int32
    vocab_iota = jax.lax.broadcasted_iota(jnp.int32, (T, vocab), 1)     # (T, vocab)
    onehot = (vocab_iota == ids).astype(jnp.float32)                    # (T, vocab)
    gates_x = jnp.dot(onehot, embproj_ref[...],
                      preferred_element_type=jnp.float32)               # (T, 4H)

    # (2) Time recurrence, statically unrolled; h/c live in vregs (loop carries).
    whh = whh_ref[...]                                                  # (H, 4H), loaded once
    h = jnp.zeros((1, H), jnp.float32)
    c = jnp.zeros((1, H), jnp.float32)
    for t in range(T):                                                  # T is static -> unrolled
        gates = gates_x[t:t + 1, :] + jnp.dot(h, whh,
                                              preferred_element_type=jnp.float32)  # (1, 4H)
        # 2 full-width EUP ops instead of 4 sliced ones; gate extraction is XLU work.
        # PyTorch LSTM gate order: i, f, g, o.
        sig = jax.nn.sigmoid(gates)                                     # (1, 4H)
        tnh = jnp.tanh(gates)                                           # (1, 4H)
        i_g = sig[:, 0 * H:1 * H]
        f_g = sig[:, 1 * H:2 * H]
        g_g = tnh[:, 2 * H:3 * H]
        o_g = sig[:, 3 * H:4 * H]
        c = f_g * c + i_g * g_g
        h = o_g * jnp.tanh(c)
        hs_ref[t:t + 1, :] = h          # per-step vst, off the serial chain; frees h_t vregs

    # (3) Batched output head + log_softmax over the tag dim, single store.
    #     (TAG=8 < 128 lanes -> masked store; accepted, output is only T*TAG*4 bytes.)
    hs = hs_ref[...]                                                    # (T, H)
    tag = (jnp.dot(hs, wout_ref[...], preferred_element_type=jnp.float32)
           + bout_ref[...])                                             # (T, TAG)
    m = jnp.max(tag, axis=-1, keepdims=True)
    lse = m + jnp.log(jnp.sum(jnp.exp(tag - m), axis=-1, keepdims=True))
    out_ref[...] = tag - lse


def lstm_classifier_forward(sentence, emb_table, w_ih, w_hh, b_ih, b_hh, w_out, b_out):
    """sentence: (T,) int32 token ids. Returns (T, tagset_size) float32 log-probs."""
    T = sentence.shape[0]
    vocab, E = emb_table.shape
    H = w_hh.shape[1]
    TAG = w_out.shape[0]

    # Static weight folding (not per-call input compute): one (vocab, 4H) table replaces
    # the embedding table, W_ih and both biases.
    emb_proj = (jnp.asarray(emb_table, jnp.float32) @ jnp.asarray(w_ih, jnp.float32).T
                + jnp.asarray(b_ih + b_hh, jnp.float32)[None, :])       # (vocab, 4H)
    whh_t = jnp.asarray(w_hh, jnp.float32).T                            # (H, 4H)
    wout_t = jnp.asarray(w_out, jnp.float32).T                          # (H, TAG)
    bout = jnp.asarray(b_out, jnp.float32)[None, :]                     # (1, TAG)
    ids2d = jnp.asarray(sentence, jnp.int32).reshape(T, 1)              # (T, 1)

    # Advisory cost hint so XLA schedules around this tiny custom call sensibly.
    flops = 2 * (T * vocab * 4 * H + T * H * 4 * H + T * H * TAG)
    transcendentals = T * (2 * 4 * H + H) + T * TAG
    bytes_accessed = 4 * (T + vocab * 4 * H + H * 4 * H + H * TAG + TAG + T * TAG)

    vmem = pl.BlockSpec(memory_space=pltpu.MemorySpace.VMEM)

    return pl.pallas_call(
        lstm_classifier_kernel,
        out_shape=jax.ShapeDtypeStruct((T, TAG), jnp.float32),
        in_specs=[vmem] * 5,
        out_specs=vmem,
        scratch_shapes=[pltpu.VMEM((T, H), jnp.float32)],
        cost_estimate=pl.CostEstimate(flops=flops,
                                      transcendentals=transcendentals,
                                      bytes_accessed=bytes_accessed),
    )(ids2d, emb_proj, whh_t, wout_t, bout)


def reference_forward(sentence, emb_table, w_ih, w_hh, b_ih, b_hh, w_out, b_out):
    """Pure-JAX reference with PyTorch LSTM semantics (gate order i,f,g,o)."""
    H = w_hh.shape[1]
    embeds = emb_table[sentence]                     # (T, E)

    def step(carry, x):
        h, c = carry
        gates = x @ w_ih.T + b_ih + h @ w_hh.T + b_hh
        i = jax.nn.sigmoid(gates[0 * H:1 * H])
        f = jax.nn.sigmoid(gates[1 * H:2 * H])
        g = jnp.tanh(gates[2 * H:3 * H])
        o = jax.nn.sigmoid(gates[3 * H:4 * H])
        c = f * c + i * g
        h = o * jnp.tanh(c)
        return (h, c), h

    h0 = jnp.zeros((H,), jnp.float32)
    (_, _), hs = jax.lax.scan(step, (h0, h0), embeds)
    tag = hs @ w_out.T + b_out
    return jax.nn.log_softmax(tag, axis=-1)


if __name__ == "__main__":
    # Module hyperparameters (small, deterministic).
    EMBEDDING_DIM = 16
    HIDDEN_DIM = 32
    VOCAB_SIZE = 20
    TAGSET_SIZE = 8
    SEQ_LEN = 8

    key = jax.random.PRNGKey(0)
    keys = jax.random.split(key, 8)
    bound = 1.0 / np.sqrt(HIDDEN_DIM)

    emb_table = jax.random.normal(keys[0], (VOCAB_SIZE, EMBEDDING_DIM), jnp.float32)
    w_ih = jax.random.uniform(keys[1], (4 * HIDDEN_DIM, EMBEDDING_DIM), jnp.float32, -bound, bound)
    w_hh = jax.random.uniform(keys[2], (4 * HIDDEN_DIM, HIDDEN_DIM), jnp.float32, -bound, bound)
    b_ih = jax.random.uniform(keys[3], (4 * HIDDEN_DIM,), jnp.float32, -bound, bound)
    b_hh = jax.random.uniform(keys[4], (4 * HIDDEN_DIM,), jnp.float32, -bound, bound)
    w_out = jax.random.uniform(keys[5], (TAGSET_SIZE, HIDDEN_DIM), jnp.float32, -bound, bound)
    b_out = jax.random.uniform(keys[6], (TAGSET_SIZE,), jnp.float32, -bound, bound)
    sentence = jax.random.randint(keys[7], (SEQ_LEN,), 0, VOCAB_SIZE, jnp.int32)

    # The one-hot gather maps out-of-range ids to a zero row; verify host-side (concrete ids).
    assert int(jnp.max(sentence)) < VOCAB_SIZE and int(jnp.min(sentence)) >= 0

    tag_scores = lstm_classifier_forward(
        sentence, emb_table, w_ih, w_hh, b_ih, b_hh, w_out, b_out)
    tag_scores = jax.block_until_ready(tag_scores)

    ref = reference_forward(sentence, emb_table, w_ih, w_hh, b_ih, b_hh, w_out, b_out)
    np.testing.assert_allclose(np.asarray(tag_scores), np.asarray(ref),
                               rtol=1e-4, atol=1e-5)
    print("KERNEL_OK")
</pallas_src>

<mosaic_0001>
module attributes {stable_mosaic.version = 11 : i64} {
  func.func @lstm_classifier_kernel(%arg0: memref<8x1xi32, #tpu.memory_space<vmem>>, %arg1: memref<20x128xf32, #tpu.memory_space<vmem>>, %arg2: memref<32x128xf32, #tpu.memory_space<vmem>>, %arg3: memref<32x8xf32, #tpu.memory_space<vmem>>, %arg4: memref<1x8xf32, #tpu.memory_space<vmem>>, %arg5: memref<8x8xf32, #tpu.memory_space<vmem>>, %arg6: memref<8x32xf32, #tpu.memory_space<vmem>>) attributes {dimension_semantics = [], scalar_prefetch = 0 : i64, scratch_operands = 1 : i64, tpu.core_type = #tpu.core_type<tc>} {
    %c0 = arith.constant 0 : index
    %c0_0 = arith.constant 0 : index
    %0 = vector.load %arg0[%c0, %c0_0] : memref<8x1xi32, #tpu.memory_space<vmem>>, vector<8x1xi32>
    %1 = tpu.iota {dimensions = array<i32: 1>} : vector<8x20xi32>
    %2 = vector.broadcast %0 : vector<8x1xi32> to vector<8x20xi32>
    %3 = arith.cmpi eq, %1, %2 : vector<8x20xi32>
    %4 = arith.extui %3 : vector<8x20xi1> to vector<8x20xi32>
    %5 = arith.sitofp %4 : vector<8x20xi32> to vector<8x20xf32>
    %c0_1 = arith.constant 0 : index
    %c0_2 = arith.constant 0 : index
    %6 = vector.load %arg1[%c0_1, %c0_2] : memref<20x128xf32, #tpu.memory_space<vmem>>, vector<20x128xf32>
    %cst = arith.constant dense<0.000000e+00> : vector<8x128xf32>
    %7 = tpu.matmul %5, %6, %cst {dimension_numbers = #tpu.dot_dimension_numbers<[1], [0], [0], [1], [0, 0, 1, 1], [], []>} : vector<8x20xf32>, vector<20x128xf32>, vector<8x128xf32> -> vector<8x128xf32>
    %c0_3 = arith.constant 0 : index
    %c0_4 = arith.constant 0 : index
    %8 = vector.load %arg2[%c0_3, %c0_4] : memref<32x128xf32, #tpu.memory_space<vmem>>, vector<32x128xf32>
    %cst_5 = arith.constant 0.000000e+00 : f32
    %9 = vector.broadcast %cst_5 : f32 to vector<1x32xf32>
    %cst_6 = arith.constant 0.000000e+00 : f32
    %10 = vector.broadcast %cst_6 : f32 to vector<1x32xf32>
    %11 = vector.extract_strided_slice %7 {offsets = [0, 0], sizes = [1, 128], strides = [1, 1]} : vector<8x128xf32> to vector<1x128xf32>
    %cst_7 = arith.constant dense<0.000000e+00> : vector<1x128xf32>
    %12 = tpu.matmul %9, %8, %cst_7 {dimension_numbers = #tpu.dot_dimension_numbers<[1], [0], [0], [1], [0, 0, 1, 1], [], []>} : vector<1x32xf32>, vector<32x128xf32>, vector<1x128xf32> -> vector<1x128xf32>
    %13 = arith.addf %11, %12 : vector<1x128xf32>
    %14 = arith.negf %13 : vector<1x128xf32>
    %15 = math.exp %14 : vector<1x128xf32>
    %cst_8 = arith.constant 1.000000e+00 : f32
    %16 = vector.broadcast %cst_8 : f32 to vector<1x128xf32>
    %17 = arith.addf %16, %15 : vector<1x128xf32>
    %18 = arith.divf %16, %17 : vector<1x128xf32>
    %19 = math.tanh %13 : vector<1x128xf32>
    %20 = vector.extract_strided_slice %18 {offsets = [0, 0], sizes = [1, 32], strides = [1, 1]} : vector<1x128xf32> to vector<1x32xf32>
    %21 = vector.extract_strided_slice %18 {offsets = [0, 32], sizes = [1, 32], strides = [1, 1]} : vector<1x128xf32> to vector<1x32xf32>
    %22 = vector.extract_strided_slice %19 {offsets = [0, 64], sizes = [1, 32], strides = [1, 1]} : vector<1x128xf32> to vector<1x32xf32>
    %23 = vector.extract_strided_slice %18 {offsets = [0, 96], sizes = [1, 32], strides = [1, 1]} : vector<1x128xf32> to vector<1x32xf32>
    %24 = arith.mulf %21, %10 : vector<1x32xf32>
    %25 = arith.mulf %20, %22 : vector<1x32xf32>
    %26 = arith.addf %24, %25 : vector<1x32xf32>
    %27 = math.tanh %26 : vector<1x32xf32>
    %28 = arith.mulf %23, %27 : vector<1x32xf32>
    %c0_9 = arith.constant 0 : index
    %c0_10 = arith.constant 0 : index
    %29 = vector.load %arg6[%c0_9, %c0_10] : memref<8x32xf32, #tpu.memory_space<vmem>>, vector<1x32xf32>
    tpu.vector_store %arg6[%c0_9, %c0_10], %28 {strides = array<i32>} : memref<8x32xf32, #tpu.memory_space<vmem>>, vector<1x32xf32>,
    %30 = vector.extract_strided_slice %7 {offsets = [1, 0], sizes = [1, 128], strides = [1, 1]} : vector<8x128xf32> to vector<1x128xf32>
    %cst_11 = arith.constant dense<0.000000e+00> : vector<1x128xf32>
    %31 = tpu.matmul %28, %8, %cst_11 {dimension_numbers = #tpu.dot_dimension_numbers<[1], [0], [0], [1], [0, 0, 1, 1], [], []>} : vector<1x32xf32>, vector<32x128xf32>, vector<1x128xf32> -> vector<1x128xf32>
    %32 = arith.addf %30, %31 : vector<1x128xf32>
    %33 = arith.negf %32 : vector<1x128xf32>
    %34 = math.exp %33 : vector<1x128xf32>
    %cst_12 = arith.constant 1.000000e+00 : f32
    %35 = vector.broadcast %cst_12 : f32 to vector<1x128xf32>
    %36 = arith.addf %35, %34 : vector<1x128xf32>
    %37 = arith.divf %35, %36 : vector<1x128xf32>
    %38 = math.tanh %32 : vector<1x128xf32>
    %39 = vector.extract_strided_slice %37 {offsets = [0, 0], sizes = [1, 32], strides = [1, 1]} : vector<1x128xf32> to vector<1x32xf32>
    %40 = vector.extract_strided_slice %37 {offsets = [0, 32], sizes = [1, 32], strides = [1, 1]} : vector<1x128xf32> to vector<1x32xf32>
    %41 = vector.extract_strided_slice %38 {offsets = [0, 64], sizes = [1, 32], strides = [1, 1]} : vector<1x128xf32> to vector<1x32xf32>
    %42 = vector.extract_strided_slice %37 {offsets = [0, 96], sizes = [1, 32], strides = [1, 1]} : vector<1x128xf32> to vector<1x32xf32>
    %43 = arith.mulf %40, %26 : vector<1x32xf32>
    %44 = arith.mulf %39, %41 : vector<1x32xf32>
    %45 = arith.addf %43, %44 : vector<1x32xf32>
    %46 = math.tanh %45 : vector<1x32xf32>
    %47 = arith.mulf %42, %46 : vector<1x32xf32>
    %c1 = arith.constant 1 : index
    %c0_13 = arith.constant 0 : index
    %48 = vector.load %arg6[%c1, %c0_13] : memref<8x32xf32, #tpu.memory_space<vmem>>, vector<1x32xf32>
    tpu.vector_store %arg6[%c1, %c0_13], %47 {strides = array<i32>} : memref<8x32xf32, #tpu.memory_space<vmem>>, vector<1x32xf32>,
    %49 = vector.extract_strided_slice %7 {offsets = [2, 0], sizes = [1, 128], strides = [1, 1]} : vector<8x128xf32> to vector<1x128xf32>
    %cst_14 = arith.constant dense<0.000000e+00> : vector<1x128xf32>
    %50 = tpu.matmul %47, %8, %cst_14 {dimension_numbers = #tpu.dot_dimension_numbers<[1], [0], [0], [1], [0, 0, 1, 1], [], []>} : vector<1x32xf32>, vector<32x128xf32>, vector<1x128xf32> -> vector<1x128xf32>
    %51 = arith.addf %49, %50 : vector<1x128xf32>
    %52 = arith.negf %51 : vector<1x128xf32>
    %53 = math.exp %52 : vector<1x128xf32>
    %cst_15 = arith.constant 1.000000e+00 : f32
    %54 = vector.broadcast %cst_15 : f32 to vector<1x128xf32>
    %55 = arith.addf %54, %53 : vector<1x128xf32>
    %56 = arith.divf %54, %55 : vector<1x128xf32>
    %57 = math.tanh %51 : vector<1x128xf32>
    %58 = vector.extract_strided_slice %56 {offsets = [0, 0], sizes = [1, 32], strides = [1, 1]} : vector<1x128xf32> to vector<1x32xf32>
    %59 = vector.extract_strided_slice %56 {offsets = [0, 32], sizes = [1, 32], strides = [1, 1]} : vector<1x128xf32> to vector<1x32xf32>
    %60 = vector.extract_strided_slice %57 {offsets = [0, 64], sizes = [1, 32], strides = [1, 1]} : vector<1x128xf32> to vector<1x32xf32>
    %61 = vector.extract_strided_slice %56 {offsets = [0, 96], sizes = [1, 32], strides = [1, 1]} : vector<1x128xf32> to vector<1x32xf32>
    %62 = arith.mulf %59, %45 : vector<1x32xf32>
    %63 = arith.mulf %58, %60 : vector<1x32xf32>
    %64 = arith.addf %62, %63 : vector<1x32xf32>
    %65 = math.tanh %64 : vector<1x32xf32>
    %66 = arith.mulf %61, %65 : vector<1x32xf32>
    %c2 = arith.constant 2 : index
    %c0_16 = arith.constant 0 : index
    %67 = vector.load %arg6[%c2, %c0_16] : memref<8x32xf32, #tpu.memory_space<vmem>>, vector<1x32xf32>
    tpu.vector_store %arg6[%c2, %c0_16], %66 {strides = array<i32>} : memref<8x32xf32, #tpu.memory_space<vmem>>, vector<1x32xf32>,
    %68 = vector.extract_strided_slice %7 {offsets = [3, 0], sizes = [1, 128], strides = [1, 1]} : vector<8x128xf32> to vector<1x128xf32>
    %cst_17 = arith.constant dense<0.000000e+00> : vector<1x128xf32>
    %69 = tpu.matmul %66, %8, %cst_17 {dimension_numbers = #tpu.dot_dimension_numbers<[1], [0], [0], [1], [0, 0, 1, 1], [], []>} : vector<1x32xf32>, vector<32x128xf32>, vector<1x128xf32> -> vector<1x128xf32>
    %70 = arith.addf %68, %69 : vector<1x128xf32>
    %71 = arith.negf %70 : vector<1x128xf32>
    %72 = math.exp %71 : vector<1x128xf32>
    %cst_18 = arith.constant 1.000000e+00 : f32
    %73 = vector.broadcast %cst_18 : f32 to vector<1x128xf32>
    %74 = arith.addf %73, %72 : vector<1x128xf32>
    %75 = arith.divf %73, %74 : vector<1x128xf32>
    %76 = math.tanh %70 : vector<1x128xf32>
    %77 = vector.extract_strided_slice %75 {offsets = [0, 0], sizes = [1, 32], strides = [1, 1]} : vector<1x128xf32> to vector<1x32xf32>
    %78 = vector.extract_strided_slice %75 {offsets = [0, 32], sizes = [1, 32], strides = [1, 1]} : vector<1x128xf32> to vector<1x32xf32>
    %79 = vector.extract_strided_slice %76 {offsets = [0, 64], sizes = [1, 32], strides = [1, 1]} : vector<1x128xf32> to vector<1x32xf32>
    %80 = vector.extract_strided_slice %75 {offsets = [0, 96], sizes = [1, 32], strides = [1, 1]} : vector<1x128xf32> to vector<1x32xf32>
    %81 = arith.mulf %78, %64 : vector<1x32xf32>
    %82 = arith.mulf %77, %79 : vector<1x32xf32>
    %83 = arith.addf %81, %82 : vector<1x32xf32>
    %84 = math.tanh %83 : vector<1x32xf32>
    %85 = arith.mulf %80, %84 : vector<1x32xf32>
    %c3 = arith.constant 3 : index
    %c0_19 = arith.constant 0 : index
    %86 = vector.load %arg6[%c3, %c0_19] : memref<8x32xf32, #tpu.memory_space<vmem>>, vector<1x32xf32>
    tpu.vector_store %arg6[%c3, %c0_19], %85 {strides = array<i32>} : memref<8x32xf32, #tpu.memory_space<vmem>>, vector<1x32xf32>,
    %87 = vector.extract_strided_slice %7 {offsets = [4, 0], sizes = [1, 128], strides = [1, 1]} : vector<8x128xf32> to vector<1x128xf32>
    %cst_20 = arith.constant dense<0.000000e+00> : vector<1x128xf32>
    %88 = tpu.matmul %85, %8, %cst_20 {dimension_numbers = #tpu.dot_dimension_numbers<[1], [0], [0], [1], [0, 0, 1, 1], [], []>} : vector<1x32xf32>, vector<32x128xf32>, vector<1x128xf32> -> vector<1x128xf32>
    %89 = arith.addf %87, %88 : vector<1x128xf32>
    %90 = arith.negf %89 : vector<1x128xf32>
    %91 = math.exp %90 : vector<1x128xf32>
    %cst_21 = arith.constant 1.000000e+00 : f32
    %92 = vector.broadcast %cst_21 : f32 to vector<1x128xf32>
    %93 = arith.addf %92, %91 : vector<1x128xf32>
    %94 = arith.divf %92, %93 : vector<1x128xf32>
    %95 = math.tanh %89 : vector<1x128xf32>
    %96 = vector.extract_strided_slice %94 {offsets = [0, 0], sizes = [1, 32], strides = [1, 1]} : vector<1x128xf32> to vector<1x32xf32>
    %97 = vector.extract_strided_slice %94 {offsets = [0, 32], sizes = [1, 32], strides = [1, 1]} : vector<1x128xf32> to vector<1x32xf32>
    %98 = vector.extract_strided_slice %95 {offsets = [0, 64], sizes = [1, 32], strides = [1, 1]} : vector<1x128xf32> to vector<1x32xf32>
    %99 = vector.extract_strided_slice %94 {offsets = [0, 96], sizes = [1, 32], strides = [1, 1]} : vector<1x128xf32> to vector<1x32xf32>
    %100 = arith.mulf %97, %83 : vector<1x32xf32>
    %101 = arith.mulf %96, %98 : vector<1x32xf32>
    %102 = arith.addf %100, %101 : vector<1x32xf32>
    %103 = math.tanh %102 : vector<1x32xf32>
    %104 = arith.mulf %99, %103 : vector<1x32xf32>
    %c4 = arith.constant 4 : index
    %c0_22 = arith.constant 0 : index
    %105 = vector.load %arg6[%c4, %c0_22] : memref<8x32xf32, #tpu.memory_space<vmem>>, vector<1x32xf32>
    tpu.vector_store %arg6[%c4, %c0_22], %104 {strides = array<i32>} : memref<8x32xf32, #tpu.memory_space<vmem>>, vector<1x32xf32>,
    %106 = vector.extract_strided_slice %7 {offsets = [5, 0], sizes = [1, 128], strides = [1, 1]} : vector<8x128xf32> to vector<1x128xf32>
    %cst_23 = arith.constant dense<0.000000e+00> : vector<1x128xf32>
    %107 = tpu.matmul %104, %8, %cst_23 {dimension_numbers = #tpu.dot_dimension_numbers<[1], [0], [0], [1], [0, 0, 1, 1], [], []>} : vector<1x32xf32>, vector<32x128xf32>, vector<1x128xf32> -> vector<1x128xf32>
    %108 = arith.addf %106, %107 : vector<1x128xf32>
    %109 = arith.negf %108 : vector<1x128xf32>
    %110 = math.exp %109 : vector<1x128xf32>
    %cst_24 = arith.constant 1.000000e+00 : f32
    %111 = vector.broadcast %cst_24 : f32 to vector<1x128xf32>
    %112 = arith.addf %111, %110 : vector<1x128xf32>
    %113 = arith.divf %111, %112 : vector<1x128xf32>
    %114 = math.tanh %108 : vector<1x128xf32>
    %115 = vector.extract_strided_slice %113 {offsets = [0, 0], sizes = [1, 32], strides = [1, 1]} : vector<1x128xf32> to vector<1x32xf32>
    %116 = vector.extract_strided_slice %113 {offsets = [0, 32], sizes = [1, 32], strides = [1, 1]} : vector<1x128xf32> to vector<1x32xf32>
    %117 = vector.extract_strided_slice %114 {offsets = [0, 64], sizes = [1, 32], strides = [1, 1]} : vector<1x128xf32> to vector<1x32xf32>
    %118 = vector.extract_strided_slice %113 {offsets = [0, 96], sizes = [1, 32], strides = [1, 1]} : vector<1x128xf32> to vector<1x32xf32>
    %119 = arith.mulf %116, %102 : vector<1x32xf32>
    %120 = arith.mulf %115, %117 : vector<1x32xf32>
    %121 = arith.addf %119, %120 : vector<1x32xf32>
    %122 = math.tanh %121 : vector<1x32xf32>
    %123 = arith.mulf %118, %122 : vector<1x32xf32>
    %c5 = arith.constant 5 : index
    %c0_25 = arith.constant 0 : index
    %124 = vector.load %arg6[%c5, %c0_25] : memref<8x32xf32, #tpu.memory_space<vmem>>, vector<1x32xf32>
    tpu.vector_store %arg6[%c5, %c0_25], %123 {strides = array<i32>} : memref<8x32xf32, #tpu.memory_space<vmem>>, vector<1x32xf32>,
    %125 = vector.extract_strided_slice %7 {offsets = [6, 0], sizes = [1, 128], strides = [1, 1]} : vector<8x128xf32> to vector<1x128xf32>
    %cst_26 = arith.constant dense<0.000000e+00> : vector<1x128xf32>
    %126 = tpu.matmul %123, %8, %cst_26 {dimension_numbers = #tpu.dot_dimension_numbers<[1], [0], [0], [1], [0, 0, 1, 1], [], []>} : vector<1x32xf32>, vector<32x128xf32>, vector<1x128xf32> -> vector<1x128xf32>
    %127 = arith.addf %125, %126 : vector<1x128xf32>
    %128 = arith.negf %127 : vector<1x128xf32>
    %129 = math.exp %128 : vector<1x128xf32>
    %cst_27 = arith.constant 1.000000e+00 : f32
    %130 = vector.broadcast %cst_27 : f32 to vector<1x128xf32>
    %131 = arith.addf %130, %129 : vector<1x128xf32>
    %132 = arith.divf %130, %131 : vector<1x128xf32>
    %133 = math.tanh %127 : vector<1x128xf32>
    %134 = vector.extract_strided_slice %132 {offsets = [0, 0], sizes = [1, 32], strides = [1, 1]} : vector<1x128xf32> to vector<1x32xf32>
    %135 = vector.extract_strided_slice %132 {offsets = [0, 32], sizes = [1, 32], strides = [1, 1]} : vector<1x128xf32> to vector<1x32xf32>
    %136 = vector.extract_strided_slice %133 {offsets = [0, 64], sizes = [1, 32], strides = [1, 1]} : vector<1x128xf32> to vector<1x32xf32>
    %137 = vector.extract_strided_slice %132 {offsets = [0, 96], sizes = [1, 32], strides = [1, 1]} : vector<1x128xf32> to vector<1x32xf32>
    %138 = arith.mulf %135, %121 : vector<1x32xf32>
    %139 = arith.mulf %134, %136 : vector<1x32xf32>
    %140 = arith.addf %138, %139 : vector<1x32xf32>
    %141 = math.tanh %140 : vector<1x32xf32>
    %142 = arith.mulf %137, %141 : vector<1x32xf32>
    %c6 = arith.constant 6 : index
    %c0_28 = arith.constant 0 : index
    %143 = vector.load %arg6[%c6, %c0_28] : memref<8x32xf32, #tpu.memory_space<vmem>>, vector<1x32xf32>
    tpu.vector_store %arg6[%c6, %c0_28], %142 {strides = array<i32>} : memref<8x32xf32, #tpu.memory_space<vmem>>, vector<1x32xf32>,
    %144 = vector.extract_strided_slice %7 {offsets = [7, 0], sizes = [1, 128], strides = [1, 1]} : vector<8x128xf32> to vector<1x128xf32>
    %cst_29 = arith.constant dense<0.000000e+00> : vector<1x128xf32>
    %145 = tpu.matmul %142, %8, %cst_29 {dimension_numbers = #tpu.dot_dimension_numbers<[1], [0], [0], [1], [0, 0, 1, 1], [], []>} : vector<1x32xf32>, vector<32x128xf32>, vector<1x128xf32> -> vector<1x128xf32>
    %146 = arith.addf %144, %145 : vector<1x128xf32>
    %147 = arith.negf %146 : vector<1x128xf32>
    %148 = math.exp %147 : vector<1x128xf32>
    %cst_30 = arith.constant 1.000000e+00 : f32
    %149 = vector.broadcast %cst_30 : f32 to vector<1x128xf32>
    %150 = arith.addf %149, %148 : vector<1x128xf32>
    %151 = arith.divf %149, %150 : vector<1x128xf32>
    %152 = math.tanh %146 : vector<1x128xf32>
    %153 = vector.extract_strided_slice %151 {offsets = [0, 0], sizes = [1, 32], strides = [1, 1]} : vector<1x128xf32> to vector<1x32xf32>
    %154 = vector.extract_strided_slice %151 {offsets = [0, 32], sizes = [1, 32], strides = [1, 1]} : vector<1x128xf32> to vector<1x32xf32>
    %155 = vector.extract_strided_slice %152 {offsets = [0, 64], sizes = [1, 32], strides = [1, 1]} : vector<1x128xf32> to vector<1x32xf32>
    %156 = vector.extract_strided_slice %151 {offsets = [0, 96], sizes = [1, 32], strides = [1, 1]} : vector<1x128xf32> to vector<1x32xf32>
    %157 = arith.mulf %154, %140 : vector<1x32xf32>
    %158 = arith.mulf %153, %155 : vector<1x32xf32>
    %159 = arith.addf %157, %158 : vector<1x32xf32>
    %160 = math.tanh %159 : vector<1x32xf32>
    %161 = arith.mulf %156, %160 : vector<1x32xf32>
    %c7 = arith.constant 7 : index
    %c0_31 = arith.constant 0 : index
    %162 = vector.load %arg6[%c7, %c0_31] : memref<8x32xf32, #tpu.memory_space<vmem>>, vector<1x32xf32>
    tpu.vector_store %arg6[%c7, %c0_31], %161 {strides = array<i32>} : memref<8x32xf32, #tpu.memory_space<vmem>>, vector<1x32xf32>,
    %c0_32 = arith.constant 0 : index
    %c0_33 = arith.constant 0 : index
    %163 = vector.load %arg6[%c0_32, %c0_33] : memref<8x32xf32, #tpu.memory_space<vmem>>, vector<8x32xf32>
    %c0_34 = arith.constant 0 : index
    %c0_35 = arith.constant 0 : index
    %164 = vector.load %arg3[%c0_34, %c0_35] : memref<32x8xf32, #tpu.memory_space<vmem>>, vector<32x8xf32>
    %cst_36 = arith.constant dense<0.000000e+00> : vector<8x8xf32>
    %165 = tpu.matmul %163, %164, %cst_36 {dimension_numbers = #tpu.dot_dimension_numbers<[1], [0], [0], [1], [0, 0, 1, 1], [], []>} : vector<8x32xf32>, vector<32x8xf32>, vector<8x8xf32> -> vector<8x8xf32>
    %c0_37 = arith.constant 0 : index
    %c0_38 = arith.constant 0 : index
    %166 = vector.load %arg4[%c0_37, %c0_38] : memref<1x8xf32, #tpu.memory_space<vmem>>, vector<1x8xf32>
    %167 = vector.broadcast %166 : vector<1x8xf32> to vector<8x8xf32>
    %168 = arith.addf %165, %167 : vector<8x8xf32>
    %cst_39 = arith.constant dense<0xFF800000> : vector<8xf32>
    %169 = vector.multi_reduction <maximumf>, %168, %cst_39 [1] : vector<8x8xf32> to vector<8xf32>
    %170 = vector.shape_cast %169 : vector<8xf32> to vector<8x1xf32>
    %171 = vector.broadcast %170 : vector<8x1xf32> to vector<8x8xf32>
    %172 = arith.subf %168, %171 : vector<8x8xf32>
    %173 = math.exp %172 : vector<8x8xf32>
    %cst_40 = arith.constant dense<0.000000e+00> : vector<8xf32>
    %174 = vector.multi_reduction <add>, %173, %cst_40 [1] : vector<8x8xf32> to vector<8xf32>
    %175 = vector.shape_cast %174 : vector<8xf32> to vector<8x1xf32>
    %176 = math.log %175 : vector<8x1xf32>
    %177 = arith.addf %170, %176 : vector<8x1xf32>
    %178 = vector.broadcast %177 : vector<8x1xf32> to vector<8x8xf32>
    %179 = arith.subf %168, %178 : vector<8x8xf32>
    %c0_41 = arith.constant 0 : index
    %c0_42 = arith.constant 0 : index
    %180 = vector.load %arg5[%c0_41, %c0_42] : memref<8x8xf32, #tpu.memory_space<vmem>>, vector<8x8xf32>
    tpu.vector_store %arg5[%c0_41, %c0_42], %179 {strides = array<i32>} : memref<8x8xf32, #tpu.memory_space<vmem>>, vector<8x8xf32>,
    return
  }
}

</mosaic_0001>

<llo_original>
// kernel: tpu_custom_call.1
$region0: #{tpu_custom_call.1}
  #allocation0 [shape = 'u32[]', space=smem, size = 0x4, offset = 0x4, fixed_abs, tag = 'smem constant byte address 0x4 - core index']
  #allocation1 [shape = 'u32[144,128]{1,0:T(1,128)}', space=vmem, size = 0x12000, scoped, tag = 'internal scratch']
  #allocation2 [shape = 'f32[8,32]{1,0:T(8,128)}', space=vmem, size = 0x1000, scoped, tag = 'scratch operand']
  %s0 = inlined_call_operand.vmem [shape: s32[8,1], index: 0, kind: input, shape index: {}]
  %s1 = inlined_call_operand.vmem [shape: f32[20,128], index: 1, kind: input, shape index: {}]
  %s2 = inlined_call_operand.vmem [shape: f32[32,128], index: 2, kind: input, shape index: {}]
  %s3 = inlined_call_operand.vmem [shape: f32[32,8], index: 3, kind: input, shape index: {}]
  %s4 = inlined_call_operand.vmem [shape: f32[1,8], index: 4, kind: input, shape index: {}]
  %s5 = inlined_call_operand.hbm [shape: f32[8,8], index: 5, kind: output, shape index: {}]
  %s6 = sld [smem:[#allocation0]]
  $region30: #{tpu_custom_call.1} parent=0
    _
  %s8 = ssub.s32 1, %s6
  %s9 = scalar_select 0, %s8, %s6
  $region1: #{tpu_custom_call.1} parent=0
    #allocation3 [shape = 'u8[4096]{0}', space=vmem, size = 0x1000, scoped, tag = 'output window, operand 0, single buffered']
    #allocation4 [shape = 's32[1]{0}', space=sflag, size = 0x4, scoped, tag = 'scoped memory for tpu_custom_call.1']
    %10 = vsyncpa [#allocation4], 0
    // Predicated region
    $region2: #{tpu_custom_call.1} parent=1 // pred_check
      _
    $region3: #{tpu_custom_call.1} parent=1 // pred_check_branch
      %12 = sbr.rel (0) target = $region5
    $region4: #{tpu_custom_call.1} parent=1 // pred_region
      _
    $region5: #{tpu_custom_call.1} parent=1 // pred_fallthru
      _
    // Predicated region
    $region6: #{tpu_custom_call.1} parent=1 // pred_check
      _
    $region7: #{tpu_custom_call.1} parent=1 // pred_check_branch
      %14 = sbr.rel (0) target = $region9
    $region8: #{tpu_custom_call.1} parent=1 // pred_region
      _
    $region9: #{tpu_custom_call.1} parent=1 // pred_fallthru
      _
    // Predicated region
    $region10: #{tpu_custom_call.1} parent=1 // pred_check
      _
    $region11: #{tpu_custom_call.1} parent=1 // pred_check_branch
      %16 = sbr.rel (0) target = $region13
    $region12: #{tpu_custom_call.1} parent=1 // pred_region
      _
    $region13: #{tpu_custom_call.1} parent=1 // pred_fallthru
      _
    // Predicated region
    $region14: #{tpu_custom_call.1} parent=1 // pred_check
      _
    $region15: #{tpu_custom_call.1} parent=1 // pred_check_branch
      %18 = sbr.rel (0) target = $region17
    $region16: #{tpu_custom_call.1} parent=1 // pred_region
      _
    $region17: #{tpu_custom_call.1} parent=1 // pred_fallthru
      _
    // Predicated region
    $region18: #{tpu_custom_call.1} parent=1 // pred_check
      _
    $region19: #{tpu_custom_call.1} parent=1 // pred_check_branch
      %20 = sbr.rel (0) target = $region21
    $region20: #{tpu_custom_call.1} parent=1 // pred_region
      _
    $region21: #{tpu_custom_call.1} parent=1 // pred_fallthru
      _
    %v21 = vld [vmem:[%s0] sm:$0xff]
    %v22 = vlaneseq
    %v23 = vand.u32 %v22, 127
    %24 = vset.pattern.permute.xlu0 0
    %25 = vperm.xlu0 %24, %v21
    %v26 = vpop.permute.xlu0 %25
    %vm27 = vcmp.eq.s32.totalorder %v23, %v26
    %v28 = vsel %vm27, 1, 0
    %v29 = vcvt.s32.f32 %v28
    %v30 = vld [vmem:[%s1] sm:$0xff]
    %v31 = vld [vmem:[%s1 + $0x8] sm:$0xff]
    %v32 = vld [vmem:[%s1 + $0x10] sm:$0xf]
    %vm33 = vcmask 162816
    %v35 = vsel %vm33, %v29, 0
    %vm37 = vcmask 1043456
    %v39 = vsel %vm37, %v32, 0
    %41 = vmatprep.subr.mxu0 0.0
    %42 = vmatpush1.msra.mxu0 %v30
    %43 = vmatprep.subr.mxu0 0.0
    %44 = vmatpush1.msra.mxu0 %v31
    %45 = vmatprep.subr.mxu0 0.0
    %46 = vmatpush1.msra.mxu0 %v39
    %47 = vmatprep.subr.mxu0 0.0
    %48 = vmatpush1.msra.mxu0 0.0
    %49 = vmatprep.subr.mxu0 0.0
    %50 = vmatpush1.msra.mxu0 0.0
    %51 = vmatprep.subr.mxu0 0.0
    %52 = vmatpush1.msra.mxu0 0.0
    %53 = vmatprep.subr.mxu0 0.0
    %54 = vmatpush1.msra.mxu0 0.0
    %55 = vmatprep.subr.mxu0 0.0
    %56 = vmatpush1.msra.mxu0 0.0
    %57 = vmatprep.subr.mxu0 0.0
    %58 = vmatpush1.msra.mxu0 0.0
    %59 = vmatprep.subr.mxu0 0.0
    %60 = vmatpush1.msra.mxu0 0.0
    %61 = vmatprep.subr.mxu0 0.0
    %62 = vmatpush1.msra.mxu0 0.0
    %63 = vmatprep.subr.mxu0 0.0
    %64 = vmatpush1.msra.mxu0 0.0
    %65 = vmatprep.subr.mxu0 0.0
    %66 = vmatpush1.msra.mxu0 0.0
    %67 = vmatprep.subr.mxu0 0.0
    %68 = vmatpush1.msra.mxu0 0.0
    %69 = vmatprep.subr.mxu0 0.0
    %70 = vmatpush1.msra.mxu0 0.0
    %71 = vmatprep.subr.mxu0 0.0
    %72 = vmatpush1.msra.mxu0 0.0
    %73 = vmatprep.subr.mxu0 0.0
    %74 = vmatpush1.msra.mxu0 0.0
    %75 = vmatprep.subr.mxu0 0.0
    %76 = vmatpush1.msra.mxu0 0.0
    %77 = vmatprep.subr.mxu0 0.0
    %78 = vmatpush1.msra.mxu0 0.0
    %79 = vmatprep.subr.mxu0 0.0
    %80 = vmatpush1.msra.mxu0 0.0
    %81 = vmatprep.subr.mxu0 0.0
    %82 = vmatpush1.msra.mxu0 0.0
    %83 = vmatprep.subr.mxu0 0.0
    %84 = vmatpush1.msra.mxu0 0.0
    %85 = vmatprep.subr.mxu0 0.0
    %86 = vmatpush1.msra.mxu0 0.0
    %87 = vmatprep.subr.mxu0 0.0
    %88 = vmatpush1.msra.mxu0 0.0
    %89 = vmatprep.subr.mxu0 0.0
    %90 = vmatpush1.msra.mxu0 0.0
    %91 = vmatprep.subr.mxu0 0.0
    %92 = vmatpush1.msra.mxu0 0.0
    %93 = vmatprep.subr.mxu0 0.0
    %94 = vmatpush1.msra.mxu0 0.0
    %95 = vmatprep.subr.mxu0 0.0
    %96 = vmatpush1.msra.mxu0 0.0
    %97 = vmatprep.subr.mxu0 0.0
    %98 = vmatpush1.msra.mxu0 0.0
    %99 = vmatprep.subr.mxu0 0.0
    %100 = vmatpush1.msra.mxu0 0.0
    %101 = vmatprep.subr.mxu0 0.0
    %102 = vmatpush1.msra.mxu0 0.0
    %103 = vmatprep.subr.mxu0 0.0
    %104 = vmatpush1.msra.mxu0 0.0
    %105 = vmatprep.mubr.f32.mxu0 0.0
    %106 = vmatmul.mubr.f32.gmra.mrb[0].mxu0 %v35
    %v107 = vpop.f32.mrb[0].mxu0
    %v108 = vadd.f32 0.0, %v107
    %v109 = vpop.f32.mrb[0].mxu0
    %110 = vdwg.mxu0
    %v111 = vld [vmem:[%s2] sm:$0xff]
    %v112 = vld [vmem:[%s2 + $0x8] sm:$0xff]
    %v113 = vld [vmem:[%s2 + $0x10] sm:$0xff]
    %v114 = vld [vmem:[%s2 + $0x18] sm:$0xff]
    %vm115 = vcmask 261120
    %v117 = vsel %vm115, 0.0, 0
    %119 = vmatprep.subr.mxu0 0.0
    %120 = vmatpush1.msra.mxu0 %v111
    %121 = vmatprep.subr.mxu0 0.0
    %122 = vmatpush1.msra.mxu0 %v112
    %123 = vmatprep.subr.mxu0 0.0
    %124 = vmatpush1.msra.mxu0 %v113
    %125 = vmatprep.subr.mxu0 0.0
    %126 = vmatpush1.msra.mxu0 %v114
    %127 = vmatprep.subr.mxu0 0.0
    %128 = vmatpush1.msra.mxu0 0.0
    %129 = vmatprep.subr.mxu0 0.0
    %130 = vmatpush1.msra.mxu0 0.0
    %131 = vmatprep.subr.mxu0 0.0
    %132 = vmatpush1.msra.mxu0 0.0
    %133 = vmatprep.subr.mxu0 0.0
    %134 = vmatpush1.msra.mxu0 0.0
    %135 = vmatprep.subr.mxu0 0.0
    %136 = vmatpush1.msra.mxu0 0.0
    %137 = vmatprep.subr.mxu0 0.0
    %138 = vmatpush1.msra.mxu0 0.0
    %139 = vmatprep.subr.mxu0 0.0
    %140 = vmatpush1.msra.mxu0 0.0
    %141 = vmatprep.subr.mxu0 0.0
    %142 = vmatpush1.msra.mxu0 0.0
    %143 = vmatprep.subr.mxu0 0.0
    %144 = vmatpush1.msra.mxu0 0.0
    %145 = vmatprep.subr.mxu0 0.0
    %146 = vmatpush1.msra.mxu0 0.0
    %147 = vmatprep.subr.mxu0 0.0
    %148 = vmatpush1.msra.mxu0 0.0
    %149 = vmatprep.subr.mxu0 0.0
    %150 = vmatpush1.msra.mxu0 0.0
    %151 = vmatprep.subr.mxu0 0.0
    %152 = vmatpush1.msra.mxu0 0.0
    %153 = vmatprep.subr.mxu0 0.0
    %154 = vmatpush1.msra.mxu0 0.0
    %155 = vmatprep.subr.mxu0 0.0
    %156 = vmatpush1.msra.mxu0 0.0
    %157 = vmatprep.subr.mxu0 0.0
    %158 = vmatpush1.msra.mxu0 0.0
    %159 = vmatprep.subr.mxu0 0.0
    %160 = vmatpush1.msra.mxu0 0.0
    %161 = vmatprep.subr.mxu0 0.0
    %162 = vmatpush1.msra.mxu0 0.0
    %163 = vmatprep.subr.mxu0 0.0
    %164 = vmatpush1.msra.mxu0 0.0
    %165 = vmatprep.subr.mxu0 0.0
    %166 = vmatpush1.msra.mxu0 0.0
    %167 = vmatprep.subr.mxu0 0.0
    %168 = vmatpush1.msra.mxu0 0.0
    %169 = vmatprep.subr.mxu0 0.0
    %170 = vmatpush1.msra.mxu0 0.0
    %171 = vmatprep.subr.mxu0 0.0
    %172 = vmatpush1.msra.mxu0 0.0
    %173 = vmatprep.subr.mxu0 0.0
    %174 = vmatpush1.msra.mxu0 0.0
    %175 = vmatprep.subr.mxu0 0.0
    %176 = vmatpush1.msra.mxu0 0.0
    %177 = vmatprep.subr.mxu0 0.0
    %178 = vmatpush1.msra.mxu0 0.0
    %179 = vmatprep.subr.mxu0 0.0
    %180 = vmatpush1.msra.mxu0 0.0
    %181 = vmatprep.subr.mxu0 0.0
    %182 = vmatpush1.msra.mxu0 0.0
    %183 = vmatprep.mubr.f32.mxu0 0.0
    %184 = vmatmul.mubr.f32.gmra.mrb[0].mxu0 %v117
    %v185 = vpop.f32.mrb[0].mxu0
    %v186 = vadd.f32 0.0, %v185
    %v187 = vpop.f32.mrb[0].mxu0
    %188 = vdwg.mxu0
    %v189 = vadd.f32 %v108, %v186
    %v190 = vxor.u32 %v189, 2147483648
    %v191 = vmul.f32 %v190, 1.442695
    %v192 = vpow.pop %v191
    %v193 = vadd.f32 %v192, 1.0
    %v194 = vrcp.pop %v193
    %v195 = vmul.f32 1.0, %v194
    %v196 = vtanh.pop %v189
    %v197 = vmul.f32 %v195, 0.0
    %199 = vrot.lane.b32.xlu0 %v196, 64
    %v200 = vpop.permute.xlu0 %199
    %v202 = vmul.f32 %v195, %v200
    %204 = vrot.lane.b32.xlu0 %v202, 32
    %v205 = vpop.permute.xlu0 %204
    %v207 = vadd.f32 %v197, %v205
    %v208 = vtanh.pop %v207
    %210 = vrot.lane.b32.xlu0 %v208, 64
    %v211 = vpop.permute.xlu0 %210
    %v213 = vmul.f32 %v195, %v211
    %215 = vrot.lane.b32.xlu0 %v213, 32
    %v216 = vpop.permute.xlu0 %215
    %vm218 = vcmask 253952
    %219 = vst.msk [vmem:[#allocation2] sm:$0x1] %vm218, %v216
    %v220 = vsel %vm115, %v216, 0
    %222 = vmatprep.subr.mxu0 0.0
    %223 = vmatpush1.msra.mxu0 %v111
    %224 = vmatprep.subr.mxu0 0.0
    %225 = vmatpush1.msra.mxu0 %v112
    %226 = vmatprep.subr.mxu0 0.0
    %227 = vmatpush1.msra.mxu0 %v113
    %228 = vmatprep.subr.mxu0 0.0
    %229 = vmatpush1.msra.mxu0 %v114
    %230 = vmatprep.subr.mxu0 0.0
    %231 = vmatpush1.msra.mxu0 0.0
    %232 = vmatprep.subr.mxu0 0.0
    %233 = vmatpush1.msra.mxu0 0.0
    %234 = vmatprep.subr.mxu0 0.0
    %235 = vmatpush1.msra.mxu0 0.0
    %236 = vmatprep.subr.mxu0 0.0
    %237 = vmatpush1.msra.mxu0 0.0
    %238 = vmatprep.subr.mxu0 0.0
    %239 = vmatpush1.msra.mxu0 0.0
    %240 = vmatprep.subr.mxu0 0.0
    %241 = vmatpush1.msra.mxu0 0.0
    %242 = vmatprep.subr.mxu0 0.0
    %243 = vmatpush1.msra.mxu0 0.0
    %244 = vmatprep.subr.mxu0 0.0
    %245 = vmatpush1.msra.mxu0 0.0
    %246 = vmatprep.subr.mxu0 0.0
    %247 = vmatpush1.msra.mxu0 0.0
    %248 = vmatprep.subr.mxu0 0.0
    %249 = vmatpush1.msra.mxu0 0.0
    %250 = vmatprep.subr.mxu0 0.0
    %251 = vmatpush1.msra.mxu0 0.0
    %252 = vmatprep.subr.mxu0 0.0
    %253 = vmatpush1.msra.mxu0 0.0
    %254 = vmatprep.subr.mxu0 0.0
    %255 = vmatpush1.msra.mxu0 0.0
    %256 = vmatprep.subr.mxu0 0.0
    %257 = vmatpush1.msra.mxu0 0.0
    %258 = vmatprep.subr.mxu0 0.0
    %259 = vmatpush1.msra.mxu0 0.0
    %260 = vmatprep.subr.mxu0 0.0
    %261 = vmatpush1.msra.mxu0 0.0
    %262 = vmatprep.subr.mxu0 0.0
    %263 = vmatpush1.msra.mxu0 0.0
    %264 = vmatprep.subr.mxu0 0.0
    %265 = vmatpush1.msra.mxu0 0.0
    %266 = vmatprep.subr.mxu0 0.0
    %267 = vmatpush1.msra.mxu0 0.0
    %268 = vmatprep.subr.mxu0 0.0
    %269 = vmatpush1.msra.mxu0 0.0
    %270 = vmatprep.subr.mxu0 0.0
    %271 = vmatpush1.msra.mxu0 0.0
    %272 = vmatprep.subr.mxu0 0.0
    %273 = vmatpush1.msra.mxu0 0.0
    %274 = vmatprep.subr.mxu0 0.0
    %275 = vmatpush1.msra.mxu0 0.0
    %276 = vmatprep.subr.mxu0 0.0
    %277 = vmatpush1.msra.mxu0 0.0
    %278 = vmatprep.subr.mxu0 0.0
    %279 = vmatpush1.msra.mxu0 0.0
    %280 = vmatprep.subr.mxu0 0.0
    %281 = vmatpush1.msra.mxu0 0.0
    %282 = vmatprep.subr.mxu0 0.0
    %283 = vmatpush1.msra.mxu0 0.0
    %284 = vmatprep.subr.mxu0 0.0
    %285 = vmatpush1.msra.mxu0 0.0
    %286 = vmatprep.mubr.f32.mxu0 0.0
    %287 = vmatmul.mubr.f32.gmra.mrb[0].mxu0 %v220
    %v288 = vpop.f32.mrb[0].mxu0
    %v289 = vadd.f32 0.0, %v288
    %v290 = vpop.f32.mrb[0].mxu0
    %291 = vdwg.mxu0
    %v293 = vrot.slane %v289, 7
    %v295 = vadd.f32 %v108, %v293
    %v296 = vxor.u32 %v295, 2147483648
    %v297 = vmul.f32 %v296, 1.442695
    %v298 = vpow.pop %v297
    %v299 = vadd.f32 %v298, 1.0
    %v300 = vrcp.pop %v299
    %v301 = vmul.f32 1.0, %v300
    %v302 = vtanh.pop %v295
    %v304 = vrot.slane %v207, 7
    %v306 = vmul.f32 %v301, %v304
    %308 = vrot.lane.b32.xlu0 %v302, 64
    %v309 = vpop.permute.xlu0 %308
    %v311 = vmul.f32 %v301, %v309
    %313 = vrot.lane.b32.xlu0 %v311, 32
    %v314 = vpop.permute.xlu0 %313
    %v316 = vadd.f32 %v306, %v314
    %v317 = vtanh.pop %v316
    %319 = vrot.lane.b32.xlu0 %v317, 64
    %v320 = vpop.permute.xlu0 %319
    %v322 = vmul.f32 %v301, %v320
    %324 = vrot.lane.b32.xlu0 %v322, 32
    %v325 = vpop.permute.xlu0 %324
    %vm327 = vcmask 254977
    %328 = vst.msk [vmem:[#allocation2] sm:$0x2] %vm327, %v325
    %v329 = vrot.slane %v322, 1
    %330 = vrot.lane.b32.xlu0 %v329, 32
    %v331 = vpop.permute.xlu0 %330
    %v332 = vsel %vm115, %v331, 0
    %334 = vmatprep.subr.mxu0 0.0
    %335 = vmatpush1.msra.mxu0 %v111
    %336 = vmatprep.subr.mxu0 0.0
    %337 = vmatpush1.msra.mxu0 %v112
    %338 = vmatprep.subr.mxu0 0.0
    %339 = vmatpush1.msra.mxu0 %v113
    %340 = vmatprep.subr.mxu0 0.0
    %341 = vmatpush1.msra.mxu0 %v114
    %342 = vmatprep.subr.mxu0 0.0
    %343 = vmatpush1.msra.mxu0 0.0
    %344 = vmatprep.subr.mxu0 0.0
    %345 = vmatpush1.msra.mxu0 0.0
    %346 = vmatprep.subr.mxu0 0.0
    %347 = vmatpush1.msra.mxu0 0.0
    %348 = vmatprep.subr.mxu0 0.0
    %349 = vmatpush1.msra.mxu0 0.0
    %350 = vmatprep.subr.mxu0 0.0
    %351 = vmatpush1.msra.mxu0 0.0
    %352 = vmatprep.subr.mxu0 0.0
    %353 = vmatpush1.msra.mxu0 0.0
    %354 = vmatprep.subr.mxu0 0.0
    %355 = vmatpush1.msra.mxu0 0.0
    %356 = vmatprep.subr.mxu0 0.0
    %357 = vmatpush1.msra.mxu0 0.0
    %358 = vmatprep.subr.mxu0 0.0
    %359 = vmatpush1.msra.mxu0 0.0
    %360 = vmatprep.subr.mxu0 0.0
    %361 = vmatpush1.msra.mxu0 0.0
    %362 = vmatprep.subr.mxu0 0.0
    %363 = vmatpush1.msra.mxu0 0.0
    %364 = vmatprep.subr.mxu0 0.0
    %365 = vmatpush1.msra.mxu0 0.0
    %366 = vmatprep.subr.mxu0 0.0
    %367 = vmatpush1.msra.mxu0 0.0
    %368 = vmatprep.subr.mxu0 0.0
    %369 = vmatpush1.msra.mxu0 0.0
    %370 = vmatprep.subr.mxu0 0.0
    %371 = vmatpush1.msra.mxu0 0.0
    %372 = vmatprep.subr.mxu0 0.0
    %373 = vmatpush1.msra.mxu0 0.0
    %374 = vmatprep.subr.mxu0 0.0
    %375 = vmatpush1.msra.mxu0 0.0
    %376 = vmatprep.subr.mxu0 0.0
    %377 = vmatpush1.msra.mxu0 0.0
    %378 = vmatprep.subr.mxu0 0.0
    %379 = vmatpush1.msra.mxu0 0.0
    %380 = vmatprep.subr.mxu0 0.0
    %381 = vmatpush1.msra.mxu0 0.0
    %382 = vmatprep.subr.mxu0 0.0
    %383 = vmatpush1.msra.mxu0 0.0
    %384 = vmatprep.subr.mxu0 0.0
    %385 = vmatpush1.msra.mxu0 0.0
    %386 = vmatprep.subr.mxu0 0.0
    %387 = vmatpush1.msra.mxu0 0.0
    %388 = vmatprep.subr.mxu0 0.0
    %389 = vmatpush1.msra.mxu0 0.0
    %390 = vmatprep.subr.mxu0 0.0
    %391 = vmatpush1.msra.mxu0 0.0
    %392 = vmatprep.subr.mxu0 0.0
    %393 = vmatpush1.msra.mxu0 0.0
    %394 = vmatprep.subr.mxu0 0.0
    %395 = vmatpush1.msra.mxu0 0.0
    %396 = vmatprep.subr.mxu0 0.0
    %397 = vmatpush1.msra.mxu0 0.0
    %398 = vmatprep.mubr.f32.mxu0 0.0
    %399 = vmatmul.mubr.f32.gmra.mrb[0].mxu0 %v332
    %v400 = vpop.f32.mrb[0].mxu0
    %v401 = vadd.f32 0.0, %v400
    %v402 = vpop.f32.mrb[0].mxu0
    %403 = vdwg.mxu0
    %v405 = vrot.slane %v401, 6
    %v407 = vadd.f32 %v108, %v405
    %v408 = vxor.u32 %v407, 2147483648
    %v409 = vmul.f32 %v408, 1.442695
    %v410 = vpow.pop %v409
    %v411 = vadd.f32 %v410, 1.0
    %v412 = vrcp.pop %v411
    %v413 = vmul.f32 1.0, %v412
    %v414 = vtanh.pop %v407
    %v416 = vrot.slane %v316, 7
    %v418 = vmul.f32 %v413, %v416
    %420 = vrot.lane.b32.xlu0 %v414, 64
    %v421 = vpop.permute.xlu0 %420
    %v423 = vmul.f32 %v413, %v421
    %425 = vrot.lane.b32.xlu0 %v423, 32
    %v426 = vpop.permute.xlu0 %425
    %v428 = vadd.f32 %v418, %v426
    %v429 = vtanh.pop %v428
    %431 = vrot.lane.b32.xlu0 %v429, 64
    %v432 = vpop.permute.xlu0 %431
    %v434 = vmul.f32 %v413, %v432
    %436 = vrot.lane.b32.xlu0 %v434, 32
    %v437 = vpop.permute.xlu0 %436
    %vm439 = vcmask 256002
    %440 = vst.msk [vmem:[#allocation2] sm:$0x4] %vm439, %v437
    %v441 = vrot.slane %v434, 2
    %442 = vrot.lane.b32.xlu0 %v441, 32
    %v443 = vpop.permute.xlu0 %442
    %v444 = vsel %vm115, %v443, 0
    %446 = vmatprep.subr.mxu0 0.0
    %447 = vmatpush1.msra.mxu0 %v111
    %448 = vmatprep.subr.mxu0 0.0
    %449 = vmatpush1.msra.mxu0 %v112
    %450 = vmatprep.subr.mxu0 0.0
    %451 = vmatpush1.msra.mxu0 %v113
    %452 = vmatprep.subr.mxu0 0.0
    %453 = vmatpush1.msra.mxu0 %v114
    %454 = vmatprep.subr.mxu0 0.0
    %455 = vmatpush1.msra.mxu0 0.0
    %456 = vmatprep.subr.mxu0 0.0
    %457 = vmatpush1.msra.mxu0 0.0
    %458 = vmatprep.subr.mxu0 0.0
    %459 = vmatpush1.msra.mxu0 0.0
    %460 = vmatprep.subr.mxu0 0.0
    %461 = vmatpush1.msra.mxu0 0.0
    %462 = vmatprep.subr.mxu0 0.0
    %463 = vmatpush1.msra.mxu0 0.0
    %464 = vmatprep.subr.mxu0 0.0
    %465 = vmatpush1.msra.mxu0 0.0
    %466 = vmatprep.subr.mxu0 0.0
    %467 = vmatpush1.msra.mxu0 0.0
    %468 = vmatprep.subr.mxu0 0.0
    %469 = vmatpush1.msra.mxu0 0.0
    %470 = vmatprep.subr.mxu0 0.0
    %471 = vmatpush1.msra.mxu0 0.0
    %472 = vmatprep.subr.mxu0 0.0
    %473 = vmatpush1.msra.mxu0 0.0
    %474 = vmatprep.subr.mxu0 0.0
    %475 = vmatpush1.msra.mxu0 0.0
    %476 = vmatprep.subr.mxu0 0.0
    %477 = vmatpush1.msra.mxu0 0.0
    %478 = vmatprep.subr.mxu0 0.0
    %479 = vmatpush1.msra.mxu0 0.0
    %480 = vmatprep.subr.mxu0 0.0
    %481 = vmatpush1.msra.mxu0 0.0
    %482 = vmatprep.subr.mxu0 0.0
    %483 = vmatpush1.msra.mxu0 0.0
    %484 = vmatprep.subr.mxu0 0.0
    %485 = vmatpush1.msra.mxu0 0.0
    %486 = vmatprep.subr.mxu0 0.0
    %487 = vmatpush1.msra.mxu0 0.0
    %488 = vmatprep.subr.mxu0 0.0
    %489 = vmatpush1.msra.mxu0 0.0
    %490 = vmatprep.subr.mxu0 0.0
    %491 = vmatpush1.msra.mxu0 0.0
    %492 = vmatprep.subr.mxu0 0.0
    %493 = vmatpush1.msra.mxu0 0.0
    %494 = vmatprep.subr.mxu0 0.0
    %495 = vmatpush1.msra.mxu0 0.0
    %496 = vmatprep.subr.mxu0 0.0
    %497 = vmatpush1.msra.mxu0 0.0
    %498 = vmatprep.subr.mxu0 0.0
    %499 = vmatpush1.msra.mxu0 0.0
    %500 = vmatprep.subr.mxu0 0.0
    %501 = vmatpush1.msra.mxu0 0.0
    %502 = vmatprep.subr.mxu0 0.0
    %503 = vmatpush1.msra.mxu0 0.0
    %504 = vmatprep.subr.mxu0 0.0
    %505 = vmatpush1.msra.mxu0 0.0
    %506 = vmatprep.subr.mxu0 0.0
    %507 = vmatpush1.msra.mxu0 0.0
    %508 = vmatprep.subr.mxu0 0.0
    %509 = vmatpush1.msra.mxu0 0.0
    %510 = vmatprep.mubr.f32.mxu0 0.0
    %511 = vmatmul.mubr.f32.gmra.mrb[0].mxu0 %v444
    %v512 = vpop.f32.mrb[0].mxu0
    %v513 = vadd.f32 0.0, %v512
    %v514 = vpop.f32.mrb[0].mxu0
    %515 = vdwg.mxu0
    %v517 = vrot.slane %v513, 5
    %v519 = vadd.f32 %v108, %v517
    %v520 = vxor.u32 %v519, 2147483648
    %v521 = vmul.f32 %v520, 1.442695
    %v522 = vpow.pop %v521
    %v523 = vadd.f32 %v522, 1.0
    %v524 = vrcp.pop %v523
    %v525 = vmul.f32 1.0, %v524
    %v526 = vtanh.pop %v519
    %v528 = vrot.slane %v428, 7
    %v530 = vmul.f32 %v525, %v528
    %532 = vrot.lane.b32.xlu0 %v526, 64
    %v533 = vpop.permute.xlu0 %532
    %v535 = vmul.f32 %v525, %v533
    %537 = vrot.lane.b32.xlu0 %v535, 32
    %v538 = vpop.permute.xlu0 %537
    %v540 = vadd.f32 %v530, %v538
    %v541 = vtanh.pop %v540
    %543 = vrot.lane.b32.xlu0 %v541, 64
    %v544 = vpop.permute.xlu0 %543
    %v546 = vmul.f32 %v525, %v544
    %548 = vrot.lane.b32.xlu0 %v546, 32
    %v549 = vpop.permute.xlu0 %548
    %vm551 = vcmask 257027
    %552 = vst.msk [vmem:[#allocation2] sm:$0x8] %vm551, %v549
    %v553 = vrot.slane %v546, 3
    %554 = vrot.lane.b32.xlu0 %v553, 32
    %v555 = vpop.permute.xlu0 %554
    %v556 = vsel %vm115, %v555, 0
    %558 = vmatprep.subr.mxu0 0.0
    %559 = vmatpush1.msra.mxu0 %v111
    %560 = vmatprep.subr.mxu0 0.0
    %561 = vmatpush1.msra.mxu0 %v112
    %562 = vmatprep.subr.mxu0 0.0
    %563 = vmatpush1.msra.mxu0 %v113
    %564 = vmatprep.subr.mxu0 0.0
    %565 = vmatpush1.msra.mxu0 %v114
    %566 = vmatprep.subr.mxu0 0.0
    %567 = vmatpush1.msra.mxu0 0.0
    %568 = vmatprep.subr.mxu0 0.0
    %569 = vmatpush1.msra.mxu0 0.0
    %570 = vmatprep.subr.mxu0 0.0
    %571 = vmatpush1.msra.mxu0 0.0
    %572 = vmatprep.subr.mxu0 0.0
    %573 = vmatpush1.msra.mxu0 0.0
    %574 = vmatprep.subr.mxu0 0.0
    %575 = vmatpush1.msra.mxu0 0.0
    %576 = vmatprep.subr.mxu0 0.0
    %577 = vmatpush1.msra.mxu0 0.0
    %578 = vmatprep.subr.mxu0 0.0
    %579 = vmatpush1.msra.mxu0 0.0
    %580 = vmatprep.subr.mxu0 0.0
    %581 = vmatpush1.msra.mxu0 0.0
    %582 = vmatprep.subr.mxu0 0.0
    %583 = vmatpush1.msra.mxu0 0.0
    %584 = vmatprep.subr.mxu0 0.0
    %585 = vmatpush1.msra.mxu0 0.0
    %586 = vmatprep.subr.mxu0 0.0
    %587 = vmatpush1.msra.mxu0 0.0
    %588 = vmatprep.subr.mxu0 0.0
    %589 = vmatpush1.msra.mxu0 0.0
    %590 = vmatprep.subr.mxu0 0.0
    %591 = vmatpush1.msra.mxu0 0.0
    %592 = vmatprep.subr.mxu0 0.0
    %593 = vmatpush1.msra.mxu0 0.0
    %594 = vmatprep.subr.mxu0 0.0
    %595 = vmatpush1.msra.mxu0 0.0
    %596 = vmatprep.subr.mxu0 0.0
    %597 = vmatpush1.msra.mxu0 0.0
    %598 = vmatprep.subr.mxu0 0.0
    %599 = vmatpush1.msra.mxu0 0.0
    %600 = vmatprep.subr.mxu0 0.0
    %601 = vmatpush1.msra.mxu0 0.0
    %602 = vmatprep.subr.mxu0 0.0
    %603 = vmatpush1.msra.mxu0 0.0
    %604 = vmatprep.subr.mxu0 0.0
    %605 = vmatpush1.msra.mxu0 0.0
    %606 = vmatprep.subr.mxu0 0.0
    %607 = vmatpush1.msra.mxu0 0.0
    %608 = vmatprep.subr.mxu0 0.0
    %609 = vmatpush1.msra.mxu0 0.0
    %610 = vmatprep.subr.mxu0 0.0
    %611 = vmatpush1.msra.mxu0 0.0
    %612 = vmatprep.subr.mxu0 0.0
    %613 = vmatpush1.msra.mxu0 0.0
    %614 = vmatprep.subr.mxu0 0.0
    %615 = vmatpush1.msra.mxu0 0.0
    %616 = vmatprep.subr.mxu0 0.0
    %617 = vmatpush1.msra.mxu0 0.0
    %618 = vmatprep.subr.mxu0 0.0
    %619 = vmatpush1.msra.mxu0 0.0
    %620 = vmatprep.subr.mxu0 0.0
    %621 = vmatpush1.msra.mxu0 0.0
    %622 = vmatprep.mubr.f32.mxu0 0.0
    %623 = vmatmul.mubr.f32.gmra.mrb[0].mxu0 %v556
    %v624 = vpop.f32.mrb[0].mxu0
    %v625 = vadd.f32 0.0, %v624
    %v626 = vpop.f32.mrb[0].mxu0
    %627 = vdwg.mxu0
    %v629 = vrot.slane %v625, 4
    %v631 = vadd.f32 %v108, %v629
    %v632 = vxor.u32 %v631, 2147483648
    %v633 = vmul.f32 %v632, 1.442695
    %v634 = vpow.pop %v633
    %v635 = vadd.f32 %v634, 1.0
    %v636 = vrcp.pop %v635
    %v637 = vmul.f32 1.0, %v636
    %v638 = vtanh.pop %v631
    %v640 = vrot.slane %v540, 7
    %v642 = vmul.f32 %v637, %v640
    %644 = vrot.lane.b32.xlu0 %v638, 64
    %v645 = vpop.permute.xlu0 %644
    %v647 = vmul.f32 %v637, %v645
    %649 = vrot.lane.b32.xlu0 %v647, 32
    %v650 = vpop.permute.xlu0 %649
    %v652 = vadd.f32 %v642, %v650
    %v653 = vtanh.pop %v652
    %655 = vrot.lane.b32.xlu0 %v653, 64
    %v656 = vpop.permute.xlu0 %655
    %v658 = vmul.f32 %v637, %v656
    %660 = vrot.lane.b32.xlu0 %v658, 32
    %v661 = vpop.permute.xlu0 %660
    %vm663 = vcmask 258052
    %664 = vst.msk [vmem:[#allocation2] sm:$0x10] %vm663, %v661
    %v665 = vrot.slane %v658, 4
    %666 = vrot.lane.b32.xlu0 %v665, 32
    %v667 = vpop.permute.xlu0 %666
    %v668 = vsel %vm115, %v667, 0
    %670 = vmatprep.subr.mxu0 0.0
    %671 = vmatpush1.msra.mxu0 %v111
    %672 = vmatprep.subr.mxu0 0.0
    %673 = vmatpush1.msra.mxu0 %v112
    %674 = vmatprep.subr.mxu0 0.0
    %675 = vmatpush1.msra.mxu0 %v113
    %676 = vmatprep.subr.mxu0 0.0
    %677 = vmatpush1.msra.mxu0 %v114
    %678 = vmatprep.subr.mxu0 0.0
    %679 = vmatpush1.msra.mxu0 0.0
    %680 = vmatprep.subr.mxu0 0.0
    %681 = vmatpush1.msra.mxu0 0.0
    %682 = vmatprep.subr.mxu0 0.0
    %683 = vmatpush1.msra.mxu0 0.0
    %684 = vmatprep.subr.mxu0 0.0
    %685 = vmatpush1.msra.mxu0 0.0
    %686 = vmatprep.subr.mxu0 0.0
    %687 = vmatpush1.msra.mxu0 0.0
    %688 = vmatprep.subr.mxu0 0.0
    %689 = vmatpush1.msra.mxu0 0.0
    %690 = vmatprep.subr.mxu0 0.0
    %691 = vmatpush1.msra.mxu0 0.0
    %692 = vmatprep.subr.mxu0 0.0
    %693 = vmatpush1.msra.mxu0 0.0
    %694 = vmatprep.subr.mxu0 0.0
    %695 = vmatpush1.msra.mxu0 0.0
    %696 = vmatprep.subr.mxu0 0.0
    %697 = vmatpush1.msra.mxu0 0.0
    %698 = vmatprep.subr.mxu0 0.0
    %699 = vmatpush1.msra.mxu0 0.0
    %700 = vmatprep.subr.mxu0 0.0
    %701 = vmatpush1.msra.mxu0 0.0
    %702 = vmatprep.subr.mxu0 0.0
    %703 = vmatpush1.msra.mxu0 0.0
    %704 = vmatprep.subr.mxu0 0.0
    %705 = vmatpush1.msra.mxu0 0.0
    %706 = vmatprep.subr.mxu0 0.0
    %707 = vmatpush1.msra.mxu0 0.0
    %708 = vmatprep.subr.mxu0 0.0
    %709 = vmatpush1.msra.mxu0 0.0
    %710 = vmatprep.subr.mxu0 0.0
    %711 = vmatpush1.msra.mxu0 0.0
    %712 = vmatprep.subr.mxu0 0.0
    %713 = vmatpush1.msra.mxu0 0.0
    %714 = vmatprep.subr.mxu0 0.0
    %715 = vmatpush1.msra.mxu0 0.0
    %716 = vmatprep.subr.mxu0 0.0
    %717 = vmatpush1.msra.mxu0 0.0
    %718 = vmatprep.subr.mxu0 0.0
    %719 = vmatpush1.msra.mxu0 0.0
    %720 = vmatprep.subr.mxu0 0.0
    %721 = vmatpush1.msra.mxu0 0.0
    %722 = vmatprep.subr.mxu0 0.0
    %723 = vmatpush1.msra.mxu0 0.0
    %724 = vmatprep.subr.mxu0 0.0
    %725 = vmatpush1.msra.mxu0 0.0
    %726 = vmatprep.subr.mxu0 0.0
    %727 = vmatpush1.msra.mxu0 0.0
    %728 = vmatprep.subr.mxu0 0.0
    %729 = vmatpush1.msra.mxu0 0.0
    %730 = vmatprep.subr.mxu0 0.0
    %731 = vmatpush1.msra.mxu0 0.0
    %732 = vmatprep.subr.mxu0 0.0
    %733 = vmatpush1.msra.mxu0 0.0
    %734 = vmatprep.mubr.f32.mxu0 0.0
    %735 = vmatmul.mubr.f32.gmra.mrb[0].mxu0 %v668
    %v736 = vpop.f32.mrb[0].mxu0
    %v737 = vadd.f32 0.0, %v736
    %v738 = vpop.f32.mrb[0].mxu0
    %739 = vdwg.mxu0
    %v741 = vrot.slane %v737, 3
    %v743 = vadd.f32 %v108, %v741
    %v744 = vxor.u32 %v743, 2147483648
    %v745 = vmul.f32 %v744, 1.442695
    %v746 = vpow.pop %v745
    %v747 = vadd.f32 %v746, 1.0
    %v748 = vrcp.pop %v747
    %v749 = vmul.f32 1.0, %v748
    %v750 = vtanh.pop %v743
    %v752 = vrot.slane %v652, 7
    %v754 = vmul.f32 %v749, %v752
    %756 = vrot.lane.b32.xlu0 %v750, 64
    %v757 = vpop.permute.xlu0 %756
    %v759 = vmul.f32 %v749, %v757
    %761 = vrot.lane.b32.xlu0 %v759, 32
    %v762 = vpop.permute.xlu0 %761
    %v764 = vadd.f32 %v754, %v762
    %v765 = vtanh.pop %v764
    %767 = vrot.lane.b32.xlu0 %v765, 64
    %v768 = vpop.permute.xlu0 %767
    %v770 = vmul.f32 %v749, %v768
    %772 = vrot.lane.b32.xlu0 %v770, 32
    %v773 = vpop.permute.xlu0 %772
    %vm775 = vcmask 259077
    %776 = vst.msk [vmem:[#allocation2] sm:$0x20] %vm775, %v773
    %v777 = vrot.slane %v770, 5
    %778 = vrot.lane.b32.xlu0 %v777, 32
    %v779 = vpop.permute.xlu0 %778
    %v780 = vsel %vm115, %v779, 0
    %782 = vmatprep.subr.mxu0 0.0
    %783 = vmatpush1.msra.mxu0 %v111
    %784 = vmatprep.subr.mxu0 0.0
    %785 = vmatpush1.msra.mxu0 %v112
    %786 = vmatprep.subr.mxu0 0.0
    %787 = vmatpush1.msra.mxu0 %v113
    %788 = vmatprep.subr.mxu0 0.0
    %789 = vmatpush1.msra.mxu0 %v114
    %790 = vmatprep.subr.mxu0 0.0
    %791 = vmatpush1.msra.mxu0 0.0
    %792 = vmatprep.subr.mxu0 0.0
    %793 = vmatpush1.msra.mxu0 0.0
    %794 = vmatprep.subr.mxu0 0.0
    %795 = vmatpush1.msra.mxu0 0.0
    %796 = vmatprep.subr.mxu0 0.0
    %797 = vmatpush1.msra.mxu0 0.0
    %798 = vmatprep.subr.mxu0 0.0
    %799 = vmatpush1.msra.mxu0 0.0
    %800 = vmatprep.subr.mxu0 0.0
    %801 = vmatpush1.msra.mxu0 0.0
    %802 = vmatprep.subr.mxu0 0.0
    %803 = vmatpush1.msra.mxu0 0.0
    %804 = vmatprep.subr.mxu0 0.0
    %805 = vmatpush1.msra.mxu0 0.0
    %806 = vmatprep.subr.mxu0 0.0
    %807 = vmatpush1.msra.mxu0 0.0
    %808 = vmatprep.subr.mxu0 0.0
    %809 = vmatpush1.msra.mxu0 0.0
    %810 = vmatprep.subr.mxu0 0.0
    %811 = vmatpush1.msra.mxu0 0.0
    %812 = vmatprep.subr.mxu0 0.0
    %813 = vmatpush1.msra.mxu0 0.0
    %814 = vmatprep.subr.mxu0 0.0
    %815 = vmatpush1.msra.mxu0 0.0
    %816 = vmatprep.subr.mxu0 0.0
    %817 = vmatpush1.msra.mxu0 0.0
    %818 = vmatprep.subr.mxu0 0.0
    %819 = vmatpush1.msra.mxu0 0.0
    %820 = vmatprep.subr.mxu0 0.0
    %821 = vmatpush1.msra.mxu0 0.0
    %822 = vmatprep.subr.mxu0 0.0
    %823 = vmatpush1.msra.mxu0 0.0
    %824 = vmatprep.subr.mxu0 0.0
    %825 = vmatpush1.msra.mxu0 0.0
    %826 = vmatprep.subr.mxu0 0.0
    %827 = vmatpush1.msra.mxu0 0.0
    %828 = vmatprep.subr.mxu0 0.0
    %829 = vmatpush1.msra.mxu0 0.0
    %830 = vmatprep.subr.mxu0 0.0
    %831 = vmatpush1.msra.mxu0 0.0
    %832 = vmatprep.subr.mxu0 0.0
    %833 = vmatpush1.msra.mxu0 0.0
    %834 = vmatprep.subr.mxu0 0.0
    %835 = vmatpush1.msra.mxu0 0.0
    %836 = vmatprep.subr.mxu0 0.0
    %837 = vmatpush1.msra.mxu0 0.0
    %838 = vmatprep.subr.mxu0 0.0
    %839 = vmatpush1.msra.mxu0 0.0
    %840 = vmatprep.subr.mxu0 0.0
    %841 = vmatpush1.msra.mxu0 0.0
    %842 = vmatprep.subr.mxu0 0.0
    %843 = vmatpush1.msra.mxu0 0.0
    %844 = vmatprep.subr.mxu0 0.0
    %845 = vmatpush1.msra.mxu0 0.0
    %846 = vmatprep.mubr.f32.mxu0 0.0
    %847 = vmatmul.mubr.f32.gmra.mrb[0].mxu0 %v780
    %v848 = vpop.f32.mrb[0].mxu0
    %v849 = vadd.f32 0.0, %v848
    %v850 = vpop.f32.mrb[0].mxu0
    %851 = vdwg.mxu0
    %v853 = vrot.slane %v849, 2
    %v855 = vadd.f32 %v108, %v853
    %v856 = vxor.u32 %v855, 2147483648
    %v857 = vmul.f32 %v856, 1.442695
    %v858 = vpow.pop %v857
    %v859 = vadd.f32 %v858, 1.0
    %v860 = vrcp.pop %v859
    %v861 = vmul.f32 1.0, %v860
    %v862 = vtanh.pop %v855
    %v864 = vrot.slane %v764, 7
    %v866 = vmul.f32 %v861, %v864
    %868 = vrot.lane.b32.xlu0 %v862, 64
    %v869 = vpop.permute.xlu0 %868
    %v871 = vmul.f32 %v861, %v869
    %873 = vrot.lane.b32.xlu0 %v871, 32
    %v874 = vpop.permute.xlu0 %873
    %v876 = vadd.f32 %v866, %v874
    %v877 = vtanh.pop %v876
    %879 = vrot.lane.b32.xlu0 %v877, 64
    %v880 = vpop.permute.xlu0 %879
    %v882 = vmul.f32 %v861, %v880
    %884 = vrot.lane.b32.xlu0 %v882, 32
    %v885 = vpop.permute.xlu0 %884
    %vm887 = vcmask 260102
    %888 = vst.msk [vmem:[#allocation2] sm:$0x40] %vm887, %v885
    %v889 = vrot.slane %v882, 6
    %890 = vrot.lane.b32.xlu0 %v889, 32
    %v891 = vpop.permute.xlu0 %890
    %v892 = vsel %vm115, %v891, 0
    %894 = vmatprep.subr.mxu0 0.0
    %895 = vmatpush1.msra.mxu0 %v111
    %896 = vmatprep.subr.mxu0 0.0
    %897 = vmatpush1.msra.mxu0 %v112
    %898 = vmatprep.subr.mxu0 0.0
    %899 = vmatpush1.msra.mxu0 %v113
    %900 = vmatprep.subr.mxu0 0.0
    %901 = vmatpush1.msra.mxu0 %v114
    %902 = vmatprep.subr.mxu0 0.0
    %903 = vmatpush1.msra.mxu0 0.0
    %904 = vmatprep.subr.mxu0 0.0
    %905 = vmatpush1.msra.mxu0 0.0
    %906 = vmatprep.subr.mxu0 0.0
    %907 = vmatpush1.msra.mxu0 0.0
    %908 = vmatprep.subr.mxu0 0.0
    %909 = vmatpush1.msra.mxu0 0.0
    %910 = vmatprep.subr.mxu0 0.0
    %911 = vmatpush1.msra.mxu0 0.0
    %912 = vmatprep.subr.mxu0 0.0
    %913 = vmatpush1.msra.mxu0 0.0
    %914 = vmatprep.subr.mxu0 0.0
    %915 = vmatpush1.msra.mxu0 0.0
    %916 = vmatprep.subr.mxu0 0.0
    %917 = vmatpush1.msra.mxu0 0.0
    %918 = vmatprep.subr.mxu0 0.0
    %919 = vmatpush1.msra.mxu0 0.0
    %920 = vmatprep.subr.mxu0 0.0
    %921 = vmatpush1.msra.mxu0 0.0
    %922 = vmatprep.subr.mxu0 0.0
    %923 = vmatpush1.msra.mxu0 0.0
    %924 = vmatprep.subr.mxu0 0.0
    %925 = vmatpush1.msra.mxu0 0.0
    %926 = vmatprep.subr.mxu0 0.0
    %927 = vmatpush1.msra.mxu0 0.0
    %928 = vmatprep.subr.mxu0 0.0
    %929 = vmatpush1.msra.mxu0 0.0
    %930 = vmatprep.subr.mxu0 0.0
    %931 = vmatpush1.msra.mxu0 0.0
    %932 = vmatprep.subr.mxu0 0.0
    %933 = vmatpush1.msra.mxu0 0.0
    %934 = vmatprep.subr.mxu0 0.0
    %935 = vmatpush1.msra.mxu0 0.0
    %936 = vmatprep.subr.mxu0 0.0
    %937 = vmatpush1.msra.mxu0 0.0
    %938 = vmatprep.subr.mxu0 0.0
    %939 = vmatpush1.msra.mxu0 0.0
    %940 = vmatprep.subr.mxu0 0.0
    %941 = vmatpush1.msra.mxu0 0.0
    %942 = vmatprep.subr.mxu0 0.0
    %943 = vmatpush1.msra.mxu0 0.0
    %944 = vmatprep.subr.mxu0 0.0
    %945 = vmatpush1.msra.mxu0 0.0
    %946 = vmatprep.subr.mxu0 0.0
    %947 = vmatpush1.msra.mxu0 0.0
    %948 = vmatprep.subr.mxu0 0.0
    %949 = vmatpush1.msra.mxu0 0.0
    %950 = vmatprep.subr.mxu0 0.0
    %951 = vmatpush1.msra.mxu0 0.0
    %952 = vmatprep.subr.mxu0 0.0
    %953 = vmatpush1.msra.mxu0 0.0
    %954 = vmatprep.subr.mxu0 0.0
    %955 = vmatpush1.msra.mxu0 0.0
    %956 = vmatprep.subr.mxu0 0.0
    %957 = vmatpush1.msra.mxu0 0.0
    %958 = vmatprep.mubr.f32.mxu0 0.0
    %959 = vmatmul.mubr.f32.gmra.mrb[0].mxu0 %v892
    %v960 = vpop.f32.mrb[0].mxu0
    %v961 = vadd.f32 0.0, %v960
    %v962 = vpop.f32.mrb[0].mxu0
    %963 = vdwg.mxu0
    %v965 = vrot.slane %v961, 1
    %v967 = vadd.f32 %v108, %v965
    %v968 = vxor.u32 %v967, 2147483648
    %v969 = vmul.f32 %v968, 1.442695
    %v970 = vpow.pop %v969
    %v971 = vadd.f32 %v970, 1.0
    %v972 = vrcp.pop %v971
    %v973 = vmul.f32 1.0, %v972
    %v974 = vtanh.pop %v967
    %v976 = vrot.slane %v876, 7
    %v978 = vmul.f32 %v973, %v976
    %980 = vrot.lane.b32.xlu0 %v974, 64
    %v981 = vpop.permute.xlu0 %980
    %v983 = vmul.f32 %v973, %v981
    %985 = vrot.lane.b32.xlu0 %v983, 32
    %v986 = vpop.permute.xlu0 %985
    %v988 = vadd.f32 %v978, %v986
    %v989 = vtanh.pop %v988
    %991 = vrot.lane.b32.xlu0 %v989, 64
    %v992 = vpop.permute.xlu0 %991
    %v994 = vmul.f32 %v973, %v992
    %996 = vrot.lane.b32.xlu0 %v994, 32
    %v997 = vpop.permute.xlu0 %996
    %vm999 = vcmask 261127
    %1000 = vst.msk [vmem:[#allocation2] sm:$0x80] %vm999, %v997
    %v1001 = vld [vmem:[#allocation2] sm:$0xff]
    %v1002 = vld [vmem:[%s3] sm:$0xff]
    %v1003 = vld [vmem:[%s3 + $0x8] sm:$0xff]
    %v1004 = vld [vmem:[%s3 + $0x10] sm:$0xff]
    %v1005 = vld [vmem:[%s3 + $0x18] sm:$0xff]
    %v1006 = vld [vmem:[%s4] sm:$0x1]
    %v1008 = vlaneseq
    %v1009 = vshrl.u32 %v1008, 7
    %v1010 = vsub.s32 0, %v1009
    %v1011 = vrot.slane %v1006, %v1010
    %v1014 = vsel %vm115, %v1001, 0
    %1016 = vmatprep.subr.mxu0 0.0
    %1017 = vmatpush1.msra.mxu0 %v1002
    %1018 = vmatprep.subr.mxu0 0.0
    %1019 = vmatpush1.msra.mxu0 %v1003
    %1020 = vmatprep.subr.mxu0 0.0
    %1021 = vmatpush1.msra.mxu0 %v1004
    %1022 = vmatprep.subr.mxu0 0.0
    %1023 = vmatpush1.msra.mxu0 %v1005
    %1024 = vmatprep.subr.mxu0 0.0
    %1025 = vmatpush1.msra.mxu0 0.0
    %1026 = vmatprep.subr.mxu0 0.0
    %1027 = vmatpush1.msra.mxu0 0.0
    %1028 = vmatprep.subr.mxu0 0.0
    %1029 = vmatpush1.msra.mxu0 0.0
    %1030 = vmatprep.subr.mxu0 0.0
    %1031 = vmatpush1.msra.mxu0 0.0
    %1032 = vmatprep.subr.mxu0 0.0
    %1033 = vmatpush1.msra.mxu0 0.0
    %1034 = vmatprep.subr.mxu0 0.0
    %1035 = vmatpush1.msra.mxu0 0.0
    %1036 = vmatprep.subr.mxu0 0.0
    %1037 = vmatpush1.msra.mxu0 0.0
    %1038 = vmatprep.subr.mxu0 0.0
    %1039 = vmatpush1.msra.mxu0 0.0
    %1040 = vmatprep.subr.mxu0 0.0
    %1041 = vmatpush1.msra.mxu0 0.0
    %1042 = vmatprep.subr.mxu0 0.0
    %1043 = vmatpush1.msra.mxu0 0.0
    %1044 = vmatprep.subr.mxu0 0.0
    %1045 = vmatpush1.msra.mxu0 0.0
    %1046 = vmatprep.subr.mxu0 0.0
    %1047 = vmatpush1.msra.mxu0 0.0
    %1048 = vmatprep.subr.mxu0 0.0
    %1049 = vmatpush1.msra.mxu0 0.0
    %1050 = vmatprep.subr.mxu0 0.0
    %1051 = vmatpush1.msra.mxu0 0.0
    %1052 = vmatprep.subr.mxu0 0.0
    %1053 = vmatpush1.msra.mxu0 0.0
    %1054 = vmatprep.subr.mxu0 0.0
    %1055 = vmatpush1.msra.mxu0 0.0
    %1056 = vmatprep.subr.mxu0 0.0
    %1057 = vmatpush1.msra.mxu0 0.0
    %1058 = vmatprep.subr.mxu0 0.0
    %1059 = vmatpush1.msra.mxu0 0.0
    %1060 = vmatprep.subr.mxu0 0.0
    %1061 = vmatpush1.msra.mxu0 0.0
    %1062 = vmatprep.subr.mxu0 0.0
    %1063 = vmatpush1.msra.mxu0 0.0
    %1064 = vmatprep.subr.mxu0 0.0
    %1065 = vmatpush1.msra.mxu0 0.0
    %1066 = vmatprep.subr.mxu0 0.0
    %1067 = vmatpush1.msra.mxu0 0.0
    %1068 = vmatprep.subr.mxu0 0.0
    %1069 = vmatpush1.msra.mxu0 0.0
    %1070 = vmatprep.subr.mxu0 0.0
    %1071 = vmatpush1.msra.mxu0 0.0
    %1072 = vmatprep.subr.mxu0 0.0
    %1073 = vmatpush1.msra.mxu0 0.0
    %1074 = vmatprep.subr.mxu0 0.0
    %1075 = vmatpush1.msra.mxu0 0.0
    %1076 = vmatprep.subr.mxu0 0.0
    %1077 = vmatpush1.msra.mxu0 0.0
    %1078 = vmatprep.subr.mxu0 0.0
    %1079 = vmatpush1.msra.mxu0 0.0
    %1080 = vmatprep.mubr.f32.mxu0 0.0
    %1081 = vmatmul.mubr.f32.gmra.mrb[0].mxu0 %v1014
    %v1082 = vpop.f32.mrb[0].mxu0
    %v1083 = vadd.f32 %v1011, %v1082
    %v1084 = vpop.f32.mrb[0].mxu0
    %1085 = vdwg.mxu0
    %vm1086 = vcmask 64512
    %v1087 = vsel %vm1086, %v1083, -inf
    %1088 = vmax.xlane.f32.xlu0 %v1087
    %v1089 = vpop.xlane.xlu0 %1088
    %v1090 = vsub.f32 %v1083, %v1089
    %v1091 = vmul.f32 %v1090, 1.442695
    %v1092 = vpow.pop %v1091
    %v1093 = vsel %vm1086, %v1092, 0.0
    %1094 = vadd.xlane.f32.xlu0 %v1093
    %v1095 = vpop.xlane.xlu0 %1094
    %v1096 = vlog2.pop %v1095
    %v1097 = vmul.f32 %v1096, 0.6931472
    %v1098 = vadd.f32 %v1089, %v1097
    %v1099 = vsub.f32 %v1083, %v1098
    %1100 = vst.msk [vmem:[#allocation3] sm:$0xff] %vm1086, %v1099
    // Predicated region
    $region22: #{tpu_custom_call.1} parent=1 // pred_check
      _
    $region23: #{tpu_custom_call.1} parent=1 // pred_check_branch
      %1102 = sbr.rel (0) target = $region25
    $region24: #{tpu_custom_call.1} parent=1 // pred_region
      %s1104 = ssub.s32 128, 128
      %1105 = vsyncadd [#allocation4], %s1104
      %s1107 = sshll.u32 [#allocation3], 4
      %s1108 = int_to_ptr.vmem [resolvable:$true] %s1107
      %1110 = dma.vmem_to_hbm [thread:$0]  %s1108, 128, %s5, [#allocation4]
    $region25: #{tpu_custom_call.1} parent=1 // pred_fallthru
      _
    // Predicated region
    $region26: #{tpu_custom_call.1} parent=1 // pred_check
      _
    $region27: #{tpu_custom_call.1} parent=1 // pred_check_branch
      %1112 = sbr.rel (0) target = $region29
    $region28: #{tpu_custom_call.1} parent=1 // pred_region
      %1113 = dma.done [#allocation4], 128
    $region29: #{tpu_custom_call.1} parent=1 // pred_fallthru
      _
    %1114 = vsyncpa [#allocation4], 1

</llo_original>
